<compile_context>
chip_gen: v5e
topology: v5e:2x2
jax: 0.10.0
libtpu: 0.0.40
codegen_flags: <defaults>
</compile_context>

<pallas_src>
import functools

import jax
import jax.numpy as jnp
from jax.experimental import pallas as pl
from jax.experimental.pallas import tpu as pltpu


def _vmem_capacity_bytes():
    """Per-core VMEM capacity; conservative (v7x) fallback if unavailable."""
    try:
        info = pltpu.get_tpu_info()
        cap = getattr(info, "vmem_capacity_bytes", None)
        if cap:
            return int(cap)
    except Exception:
        pass
    return 64 << 20  # v7x per-TensorCore VMEM (most restrictive generation)


def _num_tensorcores():
    """TensorCores sharing one Pallas grid (megacore); fallback = 1 (v5e/v6e)."""
    try:
        info = pltpu.get_tpu_info()
        for name in ("num_cores", "core_count", "num_tensorcores",
                     "tensorcores_per_chip", "cores_per_chip"):
            val = getattr(info, name, None)
            if val:
                return int(val)
    except Exception:
        pass
    return 1


def _step_bytes(bb, lq, tk, d, dv, isz):
    """Rough per-grid-step VMEM footprint for batch block bb / key tile tk."""
    io = 2 * bb * (tk * (d + dv) + lq * d + lq * dv) * isz   # double-buffered blocks
    scratch = bb * lq * (2 + dv) * 4                         # m, l, acc (f32)
    live = 2 * bb * lq * tk * 4                              # s / p f32 temps
    return io + scratch + live


def _choose_k_block(lq, lk, d, dv, isz, budget):
    # Keep the whole key axis resident when it fits (no padding, no masking).
    if _step_bytes(1, lq, lk, d, dv, isz) <= budget:
        return lk
    # Otherwise flash-style tiling; multiples of 128 keep bias/K/V blocks
    # lane-dense & sublane-aligned (and fill bf16 [16,128] vregs).
    for tk in (2048, 1024, 512, 256, 128):
        if tk < lk and _step_bytes(1, lq, tk, d, dv, isz) <= budget:
            return tk
    return 128


def _choose_batch_block(B, per_b_bytes, budget, num_tc):
    bb = max(1, min(B, budget // max(per_b_bytes, 1)))
    while B % bb:                      # no ragged last block
        bb -= 1
    if num_tc >= 2 and B >= 2:
        # Only on multi-TC parts: keep >=2 parallel steps so the megacore has
        # work for both cores, and prefer an even step count so neither core
        # idles for a whole step.  On single-TC parts extra steps are pure
        # overhead (~0.35 us each), so we keep the biggest block instead.
        bb = min(bb, B // 2)
        while B % bb:
            bb -= 1
        for cand in range(bb, 0, -1):
            if B % cand == 0 and (B // cand) % 2 == 0:
                bb = cand
                break
    return max(bb, 1)


def _sdpa_kernel(*refs, scale, use_bf16, has_bias):
    if has_bias:
        q_ref, k_ref, v_ref, bias_ref, o_ref, m_sc, l_sc, acc_sc = refs
    else:
        q_ref, k_ref, v_ref, o_ref, m_sc, l_sc, acc_sc = refs
        bias_ref = None

    kv = pl.program_id(1)

    @pl.when(kv == 0)
    def _():
        m_sc[...] = jnp.full(m_sc.shape, -jnp.inf, m_sc.dtype)
        l_sc[...] = jnp.zeros(l_sc.shape, l_sc.dtype)
        acc_sc[...] = jnp.zeros(acc_sc.shape, acc_sc.dtype)

    q = q_ref[...]            # [bb, Lq, D]
    k = k_ref[...]            # [bb, tk, D]
    v = v_ref[...]            # [bb, tk, Dv]

    if scale is not None:
        # Scale q (Lq*D elements) instead of the [Lq, tk] score tile.
        q = q * jnp.asarray(scale, q.dtype)

    if use_bf16 and q.dtype == jnp.float32:
        q = q.astype(jnp.bfloat16)
        k = k.astype(jnp.bfloat16)

    # Batched QK^T on the MXU with f32 accumulation; contracting on K's last
    # dim avoids an explicit transpose (XLU copy).
    s = jnp.einsum("bqd,bkd->bqk", q, k,
                   preferred_element_type=jnp.float32)       # [bb, Lq, tk]

    if bias_ref is not None:
        # Trace-time additive key-padding bias (0 valid / -1e30 padded).
        # Safe only because s is accumulated in f32.
        s = s + bias_ref[...]            # [1, tk] broadcasts over [bb, Lq, tk]

    # Online softmax over the key axis (dim=2 of the attention tensor).
    m_prev = m_sc[...]
    m_new = jnp.maximum(m_prev, jnp.max(s, axis=-1, keepdims=True))
    alpha = jnp.exp(m_prev - m_new)
    p = jnp.exp(s - m_new)
    l_sc[...] = alpha * l_sc[...] + jnp.sum(p, axis=-1, keepdims=True)

    pv_dtype = jnp.bfloat16 if (use_bf16 and v.dtype == jnp.float32) else v.dtype
    acc_sc[...] = alpha * acc_sc[...] + jnp.einsum(
        "bqk,bkd->bqd", p.astype(pv_dtype), v.astype(pv_dtype),
        preferred_element_type=jnp.float32)
    m_sc[...] = m_new

    # TODO(synk): nn.Dropout(0.5) is identity in eval mode; training-mode
    # stochastic dropout (pltpu.prng_seed / prng_random_bits) not emitted here.

    @pl.when(kv == pl.num_programs(1) - 1)
    def _():
        l = l_sc[...]
        # EUP approximate reciprocal + one Newton-Raphson step, both on the
        # tiny [bb, Lq, 1] denominator -> ~free, keeps the f32 path tight.
        r = pl.reciprocal(l, approx=True)
        r = r * (2.0 - l * r)
        o_ref[...] = (acc_sc[...] * r).astype(o_ref.dtype)


def scaled_dot_product_attention(q, k, v, scale=None, *,
                                 use_bf16_matmul=True,
                                 block_b=None, block_k=None):
    """Pallas TPU equivalent of _ScaledDotProductAttention.forward (eval mode)."""
    B, Lq, D = q.shape
    Bk, Lk, Dk = k.shape
    Bv, Lkv, Dv = v.shape
    assert D == Dk and Bk == B and Bv == B and Lkv == Lk

    # Match torch `if scale:` truthiness: scale=None and scale=0.0 both mean
    # "no scaling" (quirk of the reference module, kept intentionally).
    scale = float(scale) if scale else None

    # Generation-aware VMEM budget (v7x: 64 MiB/TC, v5e/v6e: 128 MiB).
    vmem_cap = _vmem_capacity_bytes()
    vmem_limit = int(min(max(vmem_cap // 2, 16 << 20), 48 << 20))
    budget = vmem_limit // 2            # headroom so double-buffering survives
    num_tc = _num_tensorcores()

    isz = q.dtype.itemsize
    use_bf16 = bool(use_bf16_matmul)

    # Key-axis tile.
    tk = int(block_k) if block_k else _choose_k_block(Lq, Lk, D, Dv, isz, budget)
    tk = max(1, min(tk, Lk))
    if tk < Lk:
        tk = max(128, (tk // 128) * 128)   # tiled key axis: multiple of 128
    if tk >= Lk:
        tk = Lk                            # untiled: full-extent block, no pad

    k_in, v_in, bias = k, v, None
    Lk_p = Lk
    if tk < Lk:
        pad = (-Lk) % tk
        if pad:
            Lk_p = Lk + pad
            widths = ((0, 0), (0, pad), (0, 0))
            k_in = jnp.pad(k, widths)
            v_in = jnp.pad(v, widths)
            col = jnp.arange(Lk_p, dtype=jnp.int32)[None, :]
            bias = jnp.where(col < Lk, 0.0, -1e30).astype(jnp.float32)
    nk = Lk_p // tk
    has_bias = bias is not None

    per_b = _step_bytes(1, Lq, tk, D, Dv, isz)
    bb = int(block_b) if block_b else _choose_batch_block(B, per_b, budget, num_tc)
    bb = max(1, min(bb, B))
    while B % bb:
        bb -= 1

    kernel = functools.partial(_sdpa_kernel, scale=scale, use_bf16=use_bf16,
                               has_bias=has_bias)

    # Note: if profiling shows exposed DMA (wall >> compute), consider
    # pipeline_mode=pl.Buffered(3) on the k/v specs -- sweep, don't assume.
    in_specs = [
        pl.BlockSpec((bb, Lq, D), lambda b, kv: (b, 0, 0)),
        pl.BlockSpec((bb, tk, D), lambda b, kv: (b, kv, 0)),
        pl.BlockSpec((bb, tk, Dv), lambda b, kv: (b, kv, 0)),
    ]
    args = [q, k_in, v_in]
    if has_bias:
        in_specs.append(pl.BlockSpec((1, tk), lambda b, kv: (0, kv)))
        args.append(bias)

    out = pl.pallas_call(
        kernel,
        out_shape=jax.ShapeDtypeStruct((B, Lq, Dv), q.dtype),
        grid_spec=pltpu.PrefetchScalarGridSpec(
            num_scalar_prefetch=0,
            grid=(B // bb, nk),
            in_specs=in_specs,
            out_specs=pl.BlockSpec((bb, Lq, Dv), lambda b, kv: (b, 0, 0)),
            scratch_shapes=[
                pltpu.VMEM((bb, Lq, 1), jnp.float32),    # running max
                pltpu.VMEM((bb, Lq, 1), jnp.float32),    # running denom
                pltpu.VMEM((bb, Lq, Dv), jnp.float32),   # f32 accumulator
            ],
        ),
        compiler_params=pltpu.CompilerParams(
            # batch axis: parallel (megacore); key axis: reduction.
            dimension_semantics=("parallel", "arbitrary"),
            vmem_limit_bytes=vmem_limit,
        ),
    )(*args)
    return out


def _reference(q, k, v, scale=None):
    s = jnp.einsum("bqd,bkd->bqk", q, k)
    if scale:
        s = s * scale
    p = jax.nn.softmax(s, axis=2)
    return jnp.einsum("bqk,bkd->bqd", p, v)


if __name__ == "__main__":
    key = jax.random.PRNGKey(0)
    kq, kk, kvk = jax.random.split(key, 3)

    # MCAN-like small shapes: batch=2, seq=8, hidden=32.
    B, Lq, Lk, D, Dv = 2, 8, 8, 32, 32
    q = jax.random.normal(kq, (B, Lq, D), dtype=jnp.float32)
    k = jax.random.normal(kk, (B, Lk, D), dtype=jnp.float32)
    v = jax.random.normal(kvk, (B, Lk, Dv), dtype=jnp.float32)
    scale = 1.0 / (D ** 0.5)

    ref = _reference(q, k, v, scale=scale)

    # Default path: bf16 MXU operands, f32 accumulation.
    out = jax.block_until_ready(scaled_dot_product_attention(q, k, v, scale=scale))
    assert out.shape == ref.shape
    assert jnp.allclose(out, ref, atol=5e-2, rtol=5e-2)

    # Strict-numerics f32 path.
    out_f32 = jax.block_until_ready(
        scaled_dot_product_attention(q, k, v, scale=scale, use_bf16_matmul=False))
    assert jnp.allclose(out_f32, ref, atol=1e-4, rtol=1e-4)

    # Exercise the flash-style key-tiled + masked path (still small shapes).
    B2, Lq2, Lk2 = 2, 16, 200
    q2 = jax.random.normal(kq, (B2, Lq2, D), dtype=jnp.float32)
    k2 = jax.random.normal(kk, (B2, Lk2, D), dtype=jnp.float32)
    v2 = jax.random.normal(kvk, (B2, Lk2, Dv), dtype=jnp.float32)
    out2 = jax.block_until_ready(
        scaled_dot_product_attention(q2, k2, v2, scale=scale,
                                     use_bf16_matmul=False, block_k=128))
    ref2 = _reference(q2, k2, v2, scale=scale)
    assert jnp.allclose(out2, ref2, atol=1e-4, rtol=1e-4)

    print("KERNEL_OK")
</pallas_src>

<mosaic_0001>
module attributes {stable_mosaic.version = 11 : i64} {
  func.func @_sdpa_kernel(%arg0: i32, %arg1: i32, %arg2: memref<2x8x32xf32, #tpu.memory_space<vmem>>, %arg3: memref<2x8x32xf32, #tpu.memory_space<vmem>>, %arg4: memref<2x8x32xf32, #tpu.memory_space<vmem>>, %arg5: memref<2x8x32xf32, #tpu.memory_space<vmem>>, %arg6: memref<2x8x1xf32, #tpu.memory_space<vmem>>, %arg7: memref<2x8x1xf32, #tpu.memory_space<vmem>>, %arg8: memref<2x8x32xf32, #tpu.memory_space<vmem>>) attributes {dimension_semantics = [#tpu.dimension_semantics<parallel>, #tpu.dimension_semantics<arbitrary>], iteration_bounds = array<i64: 1, 1>, scalar_prefetch = 0 : i64, scratch_operands = 3 : i64, tpu.core_type = #tpu.core_type<tc>, window_params = [{transform_indices = @transform_0, window_bounds = array<i64: 2, 8, 32>}, {transform_indices = @transform_1, window_bounds = array<i64: 2, 8, 32>}, {transform_indices = @transform_2, window_bounds = array<i64: 2, 8, 32>}, {transform_indices = @transform_3, window_bounds = array<i64: 2, 8, 32>}]} {
    %c0_i32 = arith.constant 0 : i32
    %0 = arith.cmpi eq, %arg1, %c0_i32 : i32
    %1 = arith.extui %0 : i1 to i32
    %c0_i32_0 = arith.constant 0 : i32
    %2 = arith.cmpi ne, %1, %c0_i32_0 : i32
    scf.if %2 {
      %cst_33 = arith.constant 0xFF800000 : f32
      %38 = vector.broadcast %cst_33 : f32 to vector<2x8x1xf32>
      %c0_34 = arith.constant 0 : index
      %c0_35 = arith.constant 0 : index
      %c0_36 = arith.constant 0 : index
      %39 = vector.load %arg6[%c0_34, %c0_35, %c0_36] : memref<2x8x1xf32, #tpu.memory_space<vmem>>, vector<2x8x1xf32>
      tpu.vector_store %arg6[%c0_34, %c0_35, %c0_36], %38 {strides = array<i32>} : memref<2x8x1xf32, #tpu.memory_space<vmem>>, vector<2x8x1xf32>,
      %cst_37 = arith.constant 0.000000e+00 : f32
      %40 = vector.broadcast %cst_37 : f32 to vector<2x8x1xf32>
      %c0_38 = arith.constant 0 : index
      %c0_39 = arith.constant 0 : index
      %c0_40 = arith.constant 0 : index
      %41 = vector.load %arg7[%c0_38, %c0_39, %c0_40] : memref<2x8x1xf32, #tpu.memory_space<vmem>>, vector<2x8x1xf32>
      tpu.vector_store %arg7[%c0_38, %c0_39, %c0_40], %40 {strides = array<i32>} : memref<2x8x1xf32, #tpu.memory_space<vmem>>, vector<2x8x1xf32>,
      %cst_41 = arith.constant 0.000000e+00 : f32
      %42 = vector.broadcast %cst_41 : f32 to vector<2x8x32xf32>
      %c0_42 = arith.constant 0 : index
      %c0_43 = arith.constant 0 : index
      %c0_44 = arith.constant 0 : index
      %43 = vector.load %arg8[%c0_42, %c0_43, %c0_44] : memref<2x8x32xf32, #tpu.memory_space<vmem>>, vector<2x8x32xf32>
      tpu.vector_store %arg8[%c0_42, %c0_43, %c0_44], %42 {strides = array<i32>} : memref<2x8x32xf32, #tpu.memory_space<vmem>>, vector<2x8x32xf32>,
    } else {
    }
    %c0 = arith.constant 0 : index
    %c0_1 = arith.constant 0 : index
    %c0_2 = arith.constant 0 : index
    %3 = vector.load %arg2[%c0, %c0_1, %c0_2] : memref<2x8x32xf32, #tpu.memory_space<vmem>>, vector<2x8x32xf32>
    %c0_3 = arith.constant 0 : index
    %c0_4 = arith.constant 0 : index
    %c0_5 = arith.constant 0 : index
    %4 = vector.load %arg3[%c0_3, %c0_4, %c0_5] : memref<2x8x32xf32, #tpu.memory_space<vmem>>, vector<2x8x32xf32>
    %c0_6 = arith.constant 0 : index
    %c0_7 = arith.constant 0 : index
    %c0_8 = arith.constant 0 : index
    %5 = vector.load %arg4[%c0_6, %c0_7, %c0_8] : memref<2x8x32xf32, #tpu.memory_space<vmem>>, vector<2x8x32xf32>
    %cst = arith.constant 0.176776692 : f32
    %6 = vector.broadcast %cst : f32 to vector<2x8x32xf32>
    %7 = arith.mulf %3, %6 : vector<2x8x32xf32>
    %8 = arith.truncf %7 : vector<2x8x32xf32> to vector<2x8x32xbf16>
    %9 = arith.truncf %4 : vector<2x8x32xf32> to vector<2x8x32xbf16>
    "tpu.trace_start"() <{level = 10 : i32, message = "bqd,bkd->bqk"}> : () -> ()
    %cst_9 = arith.constant dense<0.000000e+00> : vector<2x8x8xf32>
    %10 = tpu.matmul %8, %9, %cst_9 {dimension_numbers = #tpu.dot_dimension_numbers<[2], [2], [1], [1], [0, 0, 0, 1, 1, 1], [0], [0]>} : vector<2x8x32xbf16>, vector<2x8x32xbf16>, vector<2x8x8xf32> -> vector<2x8x8xf32>
    "tpu.trace_stop"() : () -> ()
    %c0_10 = arith.constant 0 : index
    %c0_11 = arith.constant 0 : index
    %c0_12 = arith.constant 0 : index
    %11 = vector.load %arg6[%c0_10, %c0_11, %c0_12] : memref<2x8x1xf32, #tpu.memory_space<vmem>>, vector<2x8x1xf32>
    %cst_13 = arith.constant dense<0xFF800000> : vector<2x8xf32>
    %12 = vector.multi_reduction <maximumf>, %10, %cst_13 [2] : vector<2x8x8xf32> to vector<2x8xf32>
    %13 = vector.shape_cast %12 : vector<2x8xf32> to vector<2x8x1xf32>
    %14 = arith.maximumf %11, %13 : vector<2x8x1xf32>
    %15 = arith.subf %11, %14 : vector<2x8x1xf32>
    %16 = math.exp %15 : vector<2x8x1xf32>
    %17 = vector.broadcast %14 : vector<2x8x1xf32> to vector<2x8x8xf32>
    %18 = arith.subf %10, %17 : vector<2x8x8xf32>
    %19 = math.exp %18 : vector<2x8x8xf32>
    %c0_14 = arith.constant 0 : index
    %c0_15 = arith.constant 0 : index
    %c0_16 = arith.constant 0 : index
    %20 = vector.load %arg7[%c0_14, %c0_15, %c0_16] : memref<2x8x1xf32, #tpu.memory_space<vmem>>, vector<2x8x1xf32>
    %21 = arith.mulf %16, %20 : vector<2x8x1xf32>
    %cst_17 = arith.constant dense<0.000000e+00> : vector<2x8xf32>
    %22 = vector.multi_reduction <add>, %19, %cst_17 [2] : vector<2x8x8xf32> to vector<2x8xf32>
    %23 = vector.shape_cast %22 : vector<2x8xf32> to vector<2x8x1xf32>
    %24 = arith.addf %21, %23 : vector<2x8x1xf32>
    %c0_18 = arith.constant 0 : index
    %c0_19 = arith.constant 0 : index
    %c0_20 = arith.constant 0 : index
    %25 = vector.load %arg7[%c0_18, %c0_19, %c0_20] : memref<2x8x1xf32, #tpu.memory_space<vmem>>, vector<2x8x1xf32>
    tpu.vector_store %arg7[%c0_18, %c0_19, %c0_20], %24 {strides = array<i32>} : memref<2x8x1xf32, #tpu.memory_space<vmem>>, vector<2x8x1xf32>,
    %c0_21 = arith.constant 0 : index
    %c0_22 = arith.constant 0 : index
    %c0_23 = arith.constant 0 : index
    %26 = vector.load %arg8[%c0_21, %c0_22, %c0_23] : memref<2x8x32xf32, #tpu.memory_space<vmem>>, vector<2x8x32xf32>
    %27 = vector.broadcast %16 : vector<2x8x1xf32> to vector<2x8x32xf32>
    %28 = arith.mulf %27, %26 : vector<2x8x32xf32>
    %29 = arith.truncf %19 : vector<2x8x8xf32> to vector<2x8x8xbf16>
    %30 = arith.truncf %5 : vector<2x8x32xf32> to vector<2x8x32xbf16>
    "tpu.trace_start"() <{level = 10 : i32, message = "bqk,bkd->bqd"}> : () -> ()
    %cst_24 = arith.constant dense<0.000000e+00> : vector<2x8x32xf32>
    %31 = tpu.matmul %29, %30, %cst_24 {dimension_numbers = #tpu.dot_dimension_numbers<[2], [1], [1], [2], [0, 0, 0, 1, 1, 2], [0], [0]>} : vector<2x8x8xbf16>, vector<2x8x32xbf16>, vector<2x8x32xf32> -> vector<2x8x32xf32>
    "tpu.trace_stop"() : () -> ()
    %32 = arith.addf %28, %31 : vector<2x8x32xf32>
    %c0_25 = arith.constant 0 : index
    %c0_26 = arith.constant 0 : index
    %c0_27 = arith.constant 0 : index
    %33 = vector.load %arg8[%c0_25, %c0_26, %c0_27] : memref<2x8x32xf32, #tpu.memory_space<vmem>>, vector<2x8x32xf32>
    tpu.vector_store %arg8[%c0_25, %c0_26, %c0_27], %32 {strides = array<i32>} : memref<2x8x32xf32, #tpu.memory_space<vmem>>, vector<2x8x32xf32>,
    %c0_28 = arith.constant 0 : index
    %c0_29 = arith.constant 0 : index
    %c0_30 = arith.constant 0 : index
    %34 = vector.load %arg6[%c0_28, %c0_29, %c0_30] : memref<2x8x1xf32, #tpu.memory_space<vmem>>, vector<2x8x1xf32>
    tpu.vector_store %arg6[%c0_28, %c0_29, %c0_30], %14 {strides = array<i32>} : memref<2x8x1xf32, #tpu.memory_space<vmem>>, vector<2x8x1xf32>,
    %c0_i32_31 = arith.constant 0 : i32
    %35 = arith.cmpi eq, %arg1, %c0_i32_31 : i32
    %36 = arith.extui %35 : i1 to i32
    %c0_i32_32 = arith.constant 0 : i32
    %37 = arith.cmpi ne, %36, %c0_i32_32 : i32
    scf.if %37 {
      %c0_33 = arith.constant 0 : index
      %c0_34 = arith.constant 0 : index
      %c0_35 = arith.constant 0 : index
      %38 = vector.load %arg7[%c0_33, %c0_34, %c0_35] : memref<2x8x1xf32, #tpu.memory_space<vmem>>, vector<2x8x1xf32>
      %39 = tpu.reciprocal %38 {approx = true} : vector<2x8x1xf32> -> vector<2x8x1xf32>
      %40 = arith.mulf %38, %39 : vector<2x8x1xf32>
      %cst_36 = arith.constant 2.000000e+00 : f32
      %41 = vector.broadcast %cst_36 : f32 to vector<2x8x1xf32>
      %42 = arith.subf %41, %40 : vector<2x8x1xf32>
      %43 = arith.mulf %39, %42 : vector<2x8x1xf32>
      %c0_37 = arith.constant 0 : index
      %c0_38 = arith.constant 0 : index
      %c0_39 = arith.constant 0 : index
      %44 = vector.load %arg8[%c0_37, %c0_38, %c0_39] : memref<2x8x32xf32, #tpu.memory_space<vmem>>, vector<2x8x32xf32>
      %45 = vector.broadcast %43 : vector<2x8x1xf32> to vector<2x8x32xf32>
      %46 = arith.mulf %44, %45 : vector<2x8x32xf32>
      %c0_40 = arith.constant 0 : index
      %c0_41 = arith.constant 0 : index
      %c0_42 = arith.constant 0 : index
      %47 = vector.load %arg5[%c0_40, %c0_41, %c0_42] : memref<2x8x32xf32, #tpu.memory_space<vmem>>, vector<2x8x32xf32>
      tpu.vector_store %arg5[%c0_40, %c0_41, %c0_42], %46 {strides = array<i32>} : memref<2x8x32xf32, #tpu.memory_space<vmem>>, vector<2x8x32xf32>,
    } else {
    }
    return
  }
  func.func @transform_0(%arg0: i32, %arg1: i32) -> (i32, i32, i32) {
    %c0_i32 = arith.constant 0 : i32
    %c0_i32_0 = arith.constant 0 : i32
    %c0_i32_1 = arith.constant 0 : i32
    return %arg0, %c0_i32, %c0_i32_0 : i32, i32, i32
  }
  func.func @transform_1(%arg0: i32, %arg1: i32) -> (i32, i32, i32) {
    %c0_i32 = arith.constant 0 : i32
    %c0_i32_0 = arith.constant 0 : i32
    return %arg0, %arg1, %c0_i32 : i32, i32, i32
  }
  func.func @transform_2(%arg0: i32, %arg1: i32) -> (i32, i32, i32) {
    %c0_i32 = arith.constant 0 : i32
    %c0_i32_0 = arith.constant 0 : i32
    return %arg0, %arg1, %c0_i32 : i32, i32, i32
  }
  func.func @transform_3(%arg0: i32, %arg1: i32) -> (i32, i32, i32) {
    %c0_i32 = arith.constant 0 : i32
    %c0_i32_0 = arith.constant 0 : i32
    %c0_i32_1 = arith.constant 0 : i32
    return %arg0, %c0_i32, %c0_i32_0 : i32, i32, i32
  }
}

</mosaic_0001>

<llo_original>
// kernel: tpu_custom_call.1
$region0: #{tpu_custom_call.1}
  #allocation0 [shape = 'u32[]', space=smem, size = 0x4, offset = 0x4, fixed_abs, tag = 'smem constant byte address 0x4 - core index']
  #allocation1 [shape = 'u32[72,128]{1,0:T(1,128)}', space=vmem, size = 0x9000, scoped, tag = 'internal scratch']
  #allocation2 [shape = 'f32[2,8,1]{2,1,0:T(8,128)}', space=vmem, size = 0x2000, scoped, tag = 'scratch operand']
  #allocation3 [shape = 'f32[2,8,1]{2,1,0:T(8,128)}', space=vmem, size = 0x2000, scoped, tag = 'scratch operand']
  #allocation4 [shape = 'f32[2,8,32]{2,1,0:T(8,128)}', space=vmem, size = 0x2000, scoped, tag = 'scratch operand']
  %s0 = inlined_call_operand.hbm [shape: f32[2,8,32], index: 0, kind: input, shape index: {}]
  %s1 = inlined_call_operand.hbm [shape: f32[2,8,32], index: 1, kind: input, shape index: {}]
  %s2 = inlined_call_operand.hbm [shape: f32[2,8,32], index: 2, kind: input, shape index: {}]
  %s3 = inlined_call_operand.hbm [shape: f32[2,8,32], index: 3, kind: output, shape index: {}]
  %s4 = sld [smem:[#allocation0]]
  $region42: #{tpu_custom_call.1} parent=0
    _
  %s6 = ssub.s32 1, %s4
  %s7 = scalar_select 0, %s6, %s4
  $region1: #{tpu_custom_call.1} parent=0
    #allocation5 [shape = 'u8[8192]{0}', space=vmem, size = 0x2000, scoped, tag = 'input window, operand 0, single buffered']
    #allocation6 [shape = 's32[1]{0}', space=sflag, size = 0x4, scoped, tag = 'scoped memory for tpu_custom_call.1']
    #allocation7 [shape = 's32[1]{0}', space=sflag, size = 0x4, scoped, tag = 'scoped memory for tpu_custom_call.1']
    #allocation8 [shape = 'u8[8192]{0}', space=vmem, size = 0x2000, scoped, tag = 'input window, operand 1, single buffered']
    #allocation9 [shape = 's32[1]{0}', space=sflag, size = 0x4, scoped, tag = 'scoped memory for tpu_custom_call.1']
    #allocation10 [shape = 'u8[8192]{0}', space=vmem, size = 0x2000, scoped, tag = 'input window, operand 2, single buffered']
    #allocation11 [shape = 'u8[8192]{0}', space=vmem, size = 0x2000, scoped, tag = 'output window, operand 0, single buffered']
    %8 = vsyncpa [#allocation6], 0
    %9 = vsyncpa [#allocation9], 0
    %10 = vsyncpa [#allocation7], 0
    // Predicated region
    $region2: #{tpu_custom_call.1} parent=1 // pred_check
      _
    $region3: #{tpu_custom_call.1} parent=1 // pred_check_branch
      %12 = sbr.rel (0) target = $region5
    $region4: #{tpu_custom_call.1} parent=1 // pred_region
      %14 = vsyncadd [#allocation6], 0
      %s15 = sshll.u32 %s0, 4
      %s16 = int_to_ptr.hbm [resolvable:$true] %s15
      %s17 = sshll.u32 [#allocation5], 4
      %s18 = int_to_ptr.vmem [resolvable:$true] %s17
      %23 = dma.hbm_to_vmem [thread:$0]  %s16, 256, %s18, [#allocation6], 128, 128, 8
    $region5: #{tpu_custom_call.1} parent=1 // pred_fallthru
      _
    // Predicated region
    $region6: #{tpu_custom_call.1} parent=1 // pred_check
      _
    $region7: #{tpu_custom_call.1} parent=1 // pred_check_branch
      %25 = sbr.rel (0) target = $region9
    $region8: #{tpu_custom_call.1} parent=1 // pred_region
      %27 = vsyncadd [#allocation9], 0
      %s28 = sshll.u32 %s1, 4
      %s29 = int_to_ptr.hbm [resolvable:$true] %s28
      %s30 = sshll.u32 [#allocation8], 4
      %s31 = int_to_ptr.vmem [resolvable:$true] %s30
      %36 = dma.hbm_to_vmem [thread:$0]  %s29, 256, %s31, [#allocation9], 128, 128, 8
    $region9: #{tpu_custom_call.1} parent=1 // pred_fallthru
      _
    // Predicated region
    $region10: #{tpu_custom_call.1} parent=1 // pred_check
      _
    $region11: #{tpu_custom_call.1} parent=1 // pred_check_branch
      %38 = sbr.rel (0) target = $region13
    $region12: #{tpu_custom_call.1} parent=1 // pred_region
      %40 = vsyncadd [#allocation9], 0
      %s41 = sshll.u32 %s2, 4
      %s42 = int_to_ptr.hbm [resolvable:$true] %s41
      %s43 = sshll.u32 [#allocation10], 4
      %s44 = int_to_ptr.vmem [resolvable:$true] %s43
      %49 = dma.hbm_to_vmem [thread:$0]  %s42, 256, %s44, [#allocation9], 128, 128, 8
    $region13: #{tpu_custom_call.1} parent=1 // pred_fallthru
      _
    // Predicated region
    $region14: #{tpu_custom_call.1} parent=1 // pred_check
      _
    $region15: #{tpu_custom_call.1} parent=1 // pred_check_branch
      %51 = sbr.rel (0) target = $region17
    $region16: #{tpu_custom_call.1} parent=1 // pred_region
      %53 = dma.done [#allocation6], 256
    $region17: #{tpu_custom_call.1} parent=1 // pred_fallthru
      _
    // Predicated region
    $region18: #{tpu_custom_call.1} parent=1 // pred_check
      _
    $region19: #{tpu_custom_call.1} parent=1 // pred_check_branch
      %55 = sbr.rel (0) target = $region21
    $region20: #{tpu_custom_call.1} parent=1 // pred_region
      %57 = dma.done [#allocation9], 256
    $region21: #{tpu_custom_call.1} parent=1 // pred_fallthru
      _
    // Predicated region
    $region22: #{tpu_custom_call.1} parent=1 // pred_check
      _
    $region23: #{tpu_custom_call.1} parent=1 // pred_check_branch
      %59 = sbr.rel (0) target = $region25
    $region24: #{tpu_custom_call.1} parent=1 // pred_region
      %61 = dma.done [#allocation9], 256
    $region25: #{tpu_custom_call.1} parent=1 // pred_fallthru
      _
    %p63 = scmp.eq.s32.totalorder 0, 0
    // Predicated region
    $region26: #{tpu_custom_call.1} parent=1 // pred_check
      %p64 = pneg %p63
    $region27: #{tpu_custom_call.1} parent=1 // pred_check_branch
      %66 = sbr.rel (%p64) target = $region29
    $region28: #{tpu_custom_call.1} parent=1 // pred_region
      %vm67 = vcmask 7168
      %68 = vst.msk [vmem:[#allocation2] sm:$0xff] %vm67, -inf
      %69 = vst.msk [vmem:[#allocation2 + $0x8] sm:$0xff] %vm67, -inf
      %70 = vst.msk [vmem:[#allocation3] sm:$0xff] %vm67, 0.0
      %71 = vst.msk [vmem:[#allocation3 + $0x8] sm:$0xff] %vm67, 0.0
      %vm72 = vcmask 261120
      %73 = vst.msk [vmem:[#allocation4] sm:$0xff] %vm72, 0.0
      %74 = vst.msk [vmem:[#allocation4 + $0x8] sm:$0xff] %vm72, 0.0
    $region29: #{tpu_custom_call.1} parent=1 // pred_fallthru
      _
    %v75 = vld [vmem:[#allocation5] sm:$0xff]
    %v76 = vld [vmem:[#allocation5 + $0x8] sm:$0xff]
    %v77 = vld [vmem:[#allocation8] sm:$0xff]
    %v78 = vld [vmem:[#allocation8 + $0x8] sm:$0xff]
    %v79 = vld [vmem:[#allocation10] sm:$0xff]
    %v80 = vld [vmem:[#allocation10 + $0x8] sm:$0xff]
    %v81 = vmul.f32 %v75, 0.17677669
    %v82 = vmul.f32 %v76, 0.17677669
    %v83 = vpack.c.bf16 %v81, %v81
    %v84 = vpack.c.bf16 %v82, %v82
    %v85 = vpack.c.bf16 %v77, %v77
    %v86 = vpack.c.bf16 %v78, %v78
    %vm87 = vcmask 261120
    %v89 = vsel %vm87, %v83, 0
    %v92 = vsel %vm87, %v85, 0
    %94 = vmatpush.bf16.xpose.msra.mxu0 0
    %95 = vmatpush.bf16.xpose.msra.mxu0 0
    %96 = vmatpush.bf16.xpose.msra.mxu0 0
    %97 = vmatpush.bf16.xpose.msra.mxu0 0
    %98 = vmatpush.bf16.xpose.msra.mxu0 0
    %99 = vmatpush.bf16.xpose.msra.mxu0 0
    %100 = vmatpush.bf16.xpose.msra.mxu0 0
    %101 = vmatpush.bf16.xpose.msra.mxu0 %v92
    %102 = vmatmul.bf16.gmra.mxu0 %v89
    %v103 = vpop.f32.mrf.mxu0
    %v104 = vadd.f32 0.0, %v103
    %v105 = vpop.f32.mrf.mxu0
    %106 = vdwg.mxu0
    %v108 = vsel %vm87, %v84, 0
    %v111 = vsel %vm87, %v86, 0
    %113 = vmatpush.bf16.xpose.msra.mxu0 0
    %114 = vmatpush.bf16.xpose.msra.mxu0 0
    %115 = vmatpush.bf16.xpose.msra.mxu0 0
    %116 = vmatpush.bf16.xpose.msra.mxu0 0
    %117 = vmatpush.bf16.xpose.msra.mxu0 0
    %118 = vmatpush.bf16.xpose.msra.mxu0 0
    %119 = vmatpush.bf16.xpose.msra.mxu0 0
    %120 = vmatpush.bf16.xpose.msra.mxu0 %v111
    %121 = vmatmul.bf16.gmra.mxu0 %v108
    %v122 = vpop.f32.mrf.mxu0
    %v123 = vadd.f32 0.0, %v122
    %v124 = vpop.f32.mrf.mxu0
    %125 = vdwg.mxu0
    %v126 = vld [vmem:[#allocation2] sm:$0xff]
    %v127 = vld [vmem:[#allocation2 + $0x8] sm:$0xff]
    %vm128 = vcmask 64512
    %v129 = vsel %vm128, %v104, -inf
    %130 = vmax.xlane.f32.xlu0 %v129
    %v131 = vpop.xlane.xlu0 %130
    %v132 = vsel %vm128, %v123, -inf
    %133 = vmax.xlane.f32.xlu0 %v132
    %v134 = vpop.xlane.xlu0 %133
    %v135 = vmax.f32 %v126, %v131
    %v136 = vmax.f32 %v127, %v134
    %v137 = vsub.f32 %v126, %v135
    %v138 = vsub.f32 %v127, %v136
    %v139 = vmul.f32 %v137, 1.442695
    %v140 = vpow.pop %v139
    %v141 = vmul.f32 %v138, 1.442695
    %v142 = vpow.pop %v141
    %144 = vset.pattern.permute.xlu0 0
    %145 = vperm.xlu0 %144, %v135
    %v146 = vpop.permute.xlu0 %145
    %149 = vset.pattern.permute.xlu0 0
    %150 = vperm.xlu0 %149, %v136
    %v151 = vpop.permute.xlu0 %150
    %v153 = vsub.f32 %v104, %v146
    %v154 = vsub.f32 %v123, %v151
    %v155 = vmul.f32 %v153, 1.442695
    %v156 = vpow.pop %v155
    %v157 = vmul.f32 %v154, 1.442695
    %v158 = vpow.pop %v157
    %v159 = vld [vmem:[#allocation3] sm:$0xff]
    %v160 = vld [vmem:[#allocation3 + $0x8] sm:$0xff]
    %v161 = vmul.f32 %v140, %v159
    %v162 = vmul.f32 %v142, %v160
    %v163 = vsel %vm128, %v156, 0.0
    %164 = vadd.xlane.f32.xlu0 %v163
    %v165 = vpop.xlane.xlu0 %164
    %v166 = vsel %vm128, %v158, 0.0
    %167 = vadd.xlane.f32.xlu0 %v166
    %v168 = vpop.xlane.xlu0 %167
    %v169 = vadd.f32 %v161, %v165
    %v170 = vadd.f32 %v162, %v168
    %vm171 = vcmask 7168
    %172 = vst.msk [vmem:[#allocation3] sm:$0xff] %vm171, %v169
    %173 = vst.msk [vmem:[#allocation3 + $0x8] sm:$0xff] %vm171, %v170
    %v174 = vld [vmem:[#allocation4] sm:$0xff]
    %v175 = vld [vmem:[#allocation4 + $0x8] sm:$0xff]
    %177 = vset.pattern.permute.xlu0 0
    %178 = vperm.xlu0 %177, %v140
    %v179 = vpop.permute.xlu0 %178
    %182 = vset.pattern.permute.xlu0 0
    %183 = vperm.xlu0 %182, %v142
    %v184 = vpop.permute.xlu0 %183
    %v186 = vmul.f32 %v179, %v174
    %v187 = vmul.f32 %v184, %v175
    %v188 = vpack.c.bf16 %v156, %v156
    %v189 = vpack.c.bf16 %v158, %v158
    %v190 = vpack.c.bf16 %v79, %v79
    %v191 = vpack.c.bf16 %v80, %v80
    %v193 = vsel %vm128, %v188, 0
    %vm195 = vcmask 1043456
    %v197 = vsel %vm195, %v190, 0
    %199 = vmatpush.bf16.msra.mxu0 0
    %200 = vmatpush.bf16.msra.mxu0 0
    %201 = vmatpush.bf16.msra.mxu0 0
    %202 = vmatpush.bf16.msra.mxu0 0
    %203 = vmatpush.bf16.msra.mxu0 0
    %204 = vmatpush.bf16.msra.mxu0 0
    %205 = vmatpush.bf16.msra.mxu0 0
    %206 = vmatpush.bf16.msra.mxu0 %v197
    %207 = vmatmul.bf16.gmra.mxu0 %v193
    %v208 = vpop.f32.mrf.mxu0
    %v209 = vadd.f32 0.0, %v208
    %v210 = vpop.f32.mrf.mxu0
    %211 = vdwg.mxu0
    %v213 = vsel %vm128, %v189, 0
    %v216 = vsel %vm195, %v191, 0
    %218 = vmatpush.bf16.msra.mxu0 0
    %219 = vmatpush.bf16.msra.mxu0 0
    %220 = vmatpush.bf16.msra.mxu0 0
    %221 = vmatpush.bf16.msra.mxu0 0
    %222 = vmatpush.bf16.msra.mxu0 0
    %223 = vmatpush.bf16.msra.mxu0 0
    %224 = vmatpush.bf16.msra.mxu0 0
    %225 = vmatpush.bf16.msra.mxu0 %v216
    %226 = vmatmul.bf16.gmra.mxu0 %v213
    %v227 = vpop.f32.mrf.mxu0
    %v228 = vadd.f32 0.0, %v227
    %v229 = vpop.f32.mrf.mxu0
    %230 = vdwg.mxu0
    %v231 = vadd.f32 %v186, %v209
    %v232 = vadd.f32 %v187, %v228
    %233 = vst.msk [vmem:[#allocation4] sm:$0xff] %vm87, %v231
    %234 = vst.msk [vmem:[#allocation4 + $0x8] sm:$0xff] %vm87, %v232
    %235 = vst.msk [vmem:[#allocation2] sm:$0xff] %vm171, %v135
    %236 = vst.msk [vmem:[#allocation2 + $0x8] sm:$0xff] %vm171, %v136
    // Predicated region
    $region30: #{tpu_custom_call.1} parent=1 // pred_check
      %p237 = pneg %p63
    $region31: #{tpu_custom_call.1} parent=1 // pred_check_branch
      %239 = sbr.rel (%p237) target = $region33
    $region32: #{tpu_custom_call.1} parent=1 // pred_region
      %v240 = vld [vmem:[#allocation3] sm:$0xff]
      %v241 = vld [vmem:[#allocation3 + $0x8] sm:$0xff]
      %v242 = vrcp.pop %v240
      %v243 = vrcp.pop %v241
      %v244 = vmul.f32 %v240, %v242
      %v245 = vmul.f32 %v241, %v243
      %v246 = vsub.f32 2.0, %v244
      %v247 = vsub.f32 2.0, %v245
      %v248 = vmul.f32 %v242, %v246
      %v249 = vmul.f32 %v243, %v247
      %v250 = vld [vmem:[#allocation4] sm:$0xff]
      %v251 = vld [vmem:[#allocation4 + $0x8] sm:$0xff]
      %253 = vset.pattern.permute.xlu0 0
      %254 = vperm.xlu0 %253, %v248
      %v255 = vpop.permute.xlu0 %254
      %258 = vset.pattern.permute.xlu0 0
      %259 = vperm.xlu0 %258, %v249
      %v260 = vpop.permute.xlu0 %259
      %v262 = vmul.f32 %v250, %v255
      %v263 = vmul.f32 %v251, %v260
      %264 = vst.msk [vmem:[#allocation11] sm:$0xff] %vm87, %v262
      %265 = vst.msk [vmem:[#allocation11 + $0x8] sm:$0xff] %vm87, %v263
    $region33: #{tpu_custom_call.1} parent=1 // pred_fallthru
      _
    // Predicated region
    $region34: #{tpu_custom_call.1} parent=1 // pred_check
      _
    $region35: #{tpu_custom_call.1} parent=1 // pred_check_branch
      %267 = sbr.rel (0) target = $region37
    $region36: #{tpu_custom_call.1} parent=1 // pred_region
      %269 = vsyncadd [#allocation7], 0
      %s270 = sshll.u32 [#allocation11], 4
      %s271 = int_to_ptr.vmem [resolvable:$true] %s270
      %s272 = sshll.u32 %s3, 4
      %s273 = int_to_ptr.hbm [resolvable:$true] %s272
      %278 = dma.vmem_to_hbm [thread:$0]  %s271, 256, %s273, [#allocation7], 128, 128, 8
    $region37: #{tpu_custom_call.1} parent=1 // pred_fallthru
      _
    // Predicated region
    $region38: #{tpu_custom_call.1} parent=1 // pred_check
      _
    $region39: #{tpu_custom_call.1} parent=1 // pred_check_branch
      %280 = sbr.rel (0) target = $region41
    $region40: #{tpu_custom_call.1} parent=1 // pred_region
      %282 = dma.done [#allocation7], 256
    $region41: #{tpu_custom_call.1} parent=1 // pred_fallthru
      _
    %283 = vsyncpa [#allocation6], 1
    %284 = vsyncpa [#allocation9], 1
    %285 = vsyncpa [#allocation7], 1

</llo_original>
